<compile_context>
chip_gen: v5e
topology: v5e:2x2
jax: 0.10.0
libtpu: 0.0.40
codegen_flags: <defaults>
</compile_context>

<pallas_src>
import functools

import jax
import jax.numpy as jnp
from jax.experimental import pallas as pl
from jax.experimental.pallas import tpu as pltpu


def mlp_kernel(x_ref, w1t_ref, b1_ref, w2t_ref, b2_ref, o_ref):
    # Layer 1: h = relu(x @ W1^T + b1) -- matmul on MXU, bias/ReLU on VPU (f32).
    h = jnp.dot(x_ref[...], w1t_ref[...], preferred_element_type=jnp.float32)
    h = jnp.maximum(h + b1_ref[...], 0.0)
    # Only cast when layer-2 weights are a narrower dtype (bf16 path);
    # trace-time no-op for all-f32, preserving f32 accumulation end-to-end.
    if h.dtype != w2t_ref.dtype:
        h = h.astype(w2t_ref.dtype)
    # Layer 2 (last layer, no activation): o = h @ W2^T + b2.
    o = jnp.dot(h, w2t_ref[...], preferred_element_type=jnp.float32)
    o_ref[...] = (o + b2_ref[...]).astype(o_ref.dtype)


def prepare_params(w1, b1, w2, b2, *, compute_dtype=jnp.float32):
    """One-time parameter prep (hoisted out of the forward/call path).

    w1: (h1, in), b1: (h1,)   -- PyTorch nn.Linear convention
    w2: (out, h1), b2: (out,)
    Returns MXU-ready operands: W1^T (in,h1), b1 (1,h1), W2^T (h1,out), b2 (1,out).
    Biases stay f32 (added to the f32 accumulator inside the kernel).
    """
    w1t = jnp.asarray(w1, dtype=compute_dtype).T
    w2t = jnp.asarray(w2, dtype=compute_dtype).T
    b1_2d = jnp.asarray(b1, dtype=jnp.float32).reshape(1, -1)
    b2_2d = jnp.asarray(b2, dtype=jnp.float32).reshape(1, -1)
    return w1t, b1_2d, w2t, b2_2d


@functools.partial(jax.jit, static_argnames=("block_b",))
def net_forward_prepared(x, w1t, b1_2d, w2t, b2_2d, *, block_b=1024):
    """Forward pass with pre-prepared params. x: (batch, in_features)."""
    batch, in_features = x.shape
    h1 = w1t.shape[1]
    out_features = w2t.shape[1]

    if x.dtype != w1t.dtype:
        x = x.astype(w1t.dtype)

    # Batch tile: multiple of 8 sublanes, capped by block_b; ragged last block
    # is handled by Pallas (out-of-bounds writes are discarded).
    bm = min(block_b, ((batch + 7) // 8) * 8)
    bm = max(8, (bm // 8) * 8)
    grid = (pl.cdiv(batch, bm),)

    itemsize = jnp.dtype(x.dtype).itemsize
    cost = pl.CostEstimate(
        flops=2 * batch * (in_features * h1 + h1 * out_features),
        transcendentals=0,
        bytes_accessed=(batch * in_features * itemsize          # x read
                        + in_features * h1 * itemsize           # W1^T read
                        + h1 * out_features * itemsize          # W2^T read
                        + (h1 + out_features) * 4               # biases read
                        + batch * out_features * itemsize),     # output write
    )

    out = pl.pallas_call(
        mlp_kernel,
        out_shape=jax.ShapeDtypeStruct((batch, out_features), x.dtype),
        grid_spec=pltpu.PrefetchScalarGridSpec(
            num_scalar_prefetch=0,
            grid=grid,
            in_specs=[
                pl.BlockSpec((bm, in_features), lambda i: (i, 0)),   # x tile
                pl.BlockSpec((in_features, h1), lambda i: (0, 0)),   # W1^T resident
                pl.BlockSpec((1, h1), lambda i: (0, 0)),             # b1 resident
                pl.BlockSpec((h1, out_features), lambda i: (0, 0)),  # W2^T resident
                pl.BlockSpec((1, out_features), lambda i: (0, 0)),   # b2 resident
            ],
            out_specs=pl.BlockSpec((bm, out_features), lambda i: (i, 0)),
        ),
        compiler_params=pltpu.CompilerParams(
            dimension_semantics=("parallel",)),
        cost_estimate=cost,
    )(x, w1t, b1_2d, w2t, b2_2d)
    return out


def net_forward(x, w1, b1, w2, b2, *, block_b=1024):
    """Convenience path matching the PyTorch signature (prep NOT hoisted)."""
    w1t, b1_2d, w2t, b2_2d = prepare_params(w1, b1, w2, b2)
    return net_forward_prepared(x, w1t, b1_2d, w2t, b2_2d, block_b=block_b)


def net_reference(x, w1, b1, w2, b2):
    h = jnp.maximum(x @ w1.T + b1, 0.0)
    return h @ w2.T + b2


if __name__ == "__main__":
    # Shapes implied by the module: LazyLinear infers in_features from the
    # first forward; hidden_sizes = (128, 64) -> output has 64 features.
    batch, in_features = 8, 32
    hidden_sizes = (128, 64)

    key = jax.random.PRNGKey(0)
    kx, kw1, kb1, kw2, kb2 = jax.random.split(key, 5)

    x = jax.random.normal(kx, (batch, in_features), dtype=jnp.float32)
    # Deterministic "Kaiming-uniform-ish" init, synthetic (no checkpoint load).
    w1 = jax.random.uniform(kw1, (hidden_sizes[0], in_features),
                            minval=-1.0, maxval=1.0, dtype=jnp.float32) / jnp.sqrt(in_features)
    b1 = jax.random.uniform(kb1, (hidden_sizes[0],),
                            minval=-1.0, maxval=1.0, dtype=jnp.float32) / jnp.sqrt(in_features)
    w2 = jax.random.uniform(kw2, (hidden_sizes[1], hidden_sizes[0]),
                            minval=-1.0, maxval=1.0, dtype=jnp.float32) / jnp.sqrt(hidden_sizes[0])
    b2 = jax.random.uniform(kb2, (hidden_sizes[1],),
                            minval=-1.0, maxval=1.0, dtype=jnp.float32) / jnp.sqrt(hidden_sizes[0])

    # Hoisted one-time param prep, then the lean forward call.
    w1t, b1_2d, w2t, b2_2d = prepare_params(w1, b1, w2, b2)
    out = net_forward_prepared(x, w1t, b1_2d, w2t, b2_2d)
    out = jax.block_until_ready(out)

    ref = net_reference(x, w1, b1, w2, b2)
    assert out.shape == (batch, hidden_sizes[1])
    assert jnp.allclose(out, ref, atol=1e-5, rtol=1e-5)

    print("KERNEL_OK")
</pallas_src>

<mosaic_0001>
module attributes {stable_mosaic.version = 11 : i64} {
  func.func @mlp_kernel(%arg0: i32, %arg1: memref<8x32xf32, #tpu.memory_space<vmem>>, %arg2: memref<32x128xf32, #tpu.memory_space<vmem>>, %arg3: memref<1x128xf32, #tpu.memory_space<vmem>>, %arg4: memref<128x64xf32, #tpu.memory_space<vmem>>, %arg5: memref<1x64xf32, #tpu.memory_space<vmem>>, %arg6: memref<8x64xf32, #tpu.memory_space<vmem>>) attributes {dimension_semantics = [#tpu.dimension_semantics<parallel>], iteration_bounds = array<i64: 1>, scalar_prefetch = 0 : i64, scratch_operands = 0 : i64, tpu.core_type = #tpu.core_type<tc>, window_params = [{transform_indices = @transform_0, window_bounds = array<i64: 8, 32>}, {pipeline_mode = #tpu.pipeline_mode<synchronous>, transform_indices = @transform_1, window_bounds = array<i64: 32, 128>}, {pipeline_mode = #tpu.pipeline_mode<synchronous>, transform_indices = @transform_2, window_bounds = array<i64: 1, 128>}, {pipeline_mode = #tpu.pipeline_mode<synchronous>, transform_indices = @transform_3, window_bounds = array<i64: 128, 64>}, {pipeline_mode = #tpu.pipeline_mode<synchronous>, transform_indices = @transform_4, window_bounds = array<i64: 1, 64>}, {transform_indices = @transform_5, window_bounds = array<i64: 8, 64>}]} {
    %c0 = arith.constant 0 : index
    %c0_0 = arith.constant 0 : index
    %0 = vector.load %arg1[%c0, %c0_0] : memref<8x32xf32, #tpu.memory_space<vmem>>, vector<8x32xf32>
    %c0_1 = arith.constant 0 : index
    %c0_2 = arith.constant 0 : index
    %1 = vector.load %arg2[%c0_1, %c0_2] : memref<32x128xf32, #tpu.memory_space<vmem>>, vector<32x128xf32>
    %cst = arith.constant dense<0.000000e+00> : vector<8x128xf32>
    %2 = tpu.matmul %0, %1, %cst {dimension_numbers = #tpu.dot_dimension_numbers<[1], [0], [0], [1], [0, 0, 1, 1], [], []>} : vector<8x32xf32>, vector<32x128xf32>, vector<8x128xf32> -> vector<8x128xf32>
    %c0_3 = arith.constant 0 : index
    %c0_4 = arith.constant 0 : index
    %3 = vector.load %arg3[%c0_3, %c0_4] : memref<1x128xf32, #tpu.memory_space<vmem>>, vector<1x128xf32>
    %4 = vector.broadcast %3 : vector<1x128xf32> to vector<8x128xf32>
    %5 = arith.addf %2, %4 : vector<8x128xf32>
    %cst_5 = arith.constant 0.000000e+00 : f32
    %6 = vector.broadcast %cst_5 : f32 to vector<8x128xf32>
    %7 = arith.maximumf %5, %6 : vector<8x128xf32>
    %c0_6 = arith.constant 0 : index
    %c0_7 = arith.constant 0 : index
    %8 = vector.load %arg4[%c0_6, %c0_7] : memref<128x64xf32, #tpu.memory_space<vmem>>, vector<128x64xf32>
    %cst_8 = arith.constant dense<0.000000e+00> : vector<8x64xf32>
    %9 = tpu.matmul %7, %8, %cst_8 {dimension_numbers = #tpu.dot_dimension_numbers<[1], [0], [0], [1], [0, 0, 1, 1], [], []>} : vector<8x128xf32>, vector<128x64xf32>, vector<8x64xf32> -> vector<8x64xf32>
    %c0_9 = arith.constant 0 : index
    %c0_10 = arith.constant 0 : index
    %10 = vector.load %arg5[%c0_9, %c0_10] : memref<1x64xf32, #tpu.memory_space<vmem>>, vector<1x64xf32>
    %11 = vector.broadcast %10 : vector<1x64xf32> to vector<8x64xf32>
    %12 = arith.addf %9, %11 : vector<8x64xf32>
    %c0_11 = arith.constant 0 : index
    %c0_12 = arith.constant 0 : index
    %13 = vector.load %arg6[%c0_11, %c0_12] : memref<8x64xf32, #tpu.memory_space<vmem>>, vector<8x64xf32>
    tpu.vector_store %arg6[%c0_11, %c0_12], %12 {strides = array<i32>} : memref<8x64xf32, #tpu.memory_space<vmem>>, vector<8x64xf32>,
    return
  }
  func.func @transform_0(%arg0: i32) -> (i32, i32) {
    %c0_i32 = arith.constant 0 : i32
    %c0_i32_0 = arith.constant 0 : i32
    return %arg0, %c0_i32 : i32, i32
  }
  func.func @transform_1(%arg0: i32) -> (i32, i32) {
    %c0_i32 = arith.constant 0 : i32
    %c0_i32_0 = arith.constant 0 : i32
    %c0_i32_1 = arith.constant 0 : i32
    return %c0_i32, %c0_i32_0 : i32, i32
  }
  func.func @transform_2(%arg0: i32) -> (i32, i32) {
    %c0_i32 = arith.constant 0 : i32
    %c0_i32_0 = arith.constant 0 : i32
    %c0_i32_1 = arith.constant 0 : i32
    return %c0_i32, %c0_i32_0 : i32, i32
  }
  func.func @transform_3(%arg0: i32) -> (i32, i32) {
    %c0_i32 = arith.constant 0 : i32
    %c0_i32_0 = arith.constant 0 : i32
    %c0_i32_1 = arith.constant 0 : i32
    return %c0_i32, %c0_i32_0 : i32, i32
  }
  func.func @transform_4(%arg0: i32) -> (i32, i32) {
    %c0_i32 = arith.constant 0 : i32
    %c0_i32_0 = arith.constant 0 : i32
    %c0_i32_1 = arith.constant 0 : i32
    return %c0_i32, %c0_i32_0 : i32, i32
  }
  func.func @transform_5(%arg0: i32) -> (i32, i32) {
    %c0_i32 = arith.constant 0 : i32
    %c0_i32_0 = arith.constant 0 : i32
    return %arg0, %c0_i32 : i32, i32
  }
}

</mosaic_0001>

<llo_original>
// kernel: net_forward_prepared.1
$region0: #{net_forward_prepared.1}
  #allocation0 [shape = 'u32[]', space=smem, size = 0x4, offset = 0x4, fixed_abs, tag = 'smem constant byte address 0x4 - core index']
  #allocation1 [shape = 'u32[72,128]{1,0:T(1,128)}', space=vmem, size = 0x9000, scoped, tag = 'internal scratch']
  %s0 = inlined_call_operand.vmem [shape: f32[8,32], index: 0, kind: input, shape index: {}]
  %s1 = inlined_call_operand.vmem [shape: f32[32,128], index: 1, kind: input, shape index: {}]
  %s2 = inlined_call_operand.vmem [shape: f32[1,128], index: 2, kind: input, shape index: {}]
  %s3 = inlined_call_operand.vmem [shape: f32[128,64], index: 3, kind: input, shape index: {}]
  %s4 = inlined_call_operand.vmem [shape: f32[1,64], index: 4, kind: input, shape index: {}]
  %s5 = inlined_call_operand.hbm [shape: f32[8,64], index: 5, kind: output, shape index: {}]
  %s6 = sld [smem:[#allocation0]]
  $region30: #{net_forward_prepared.1} parent=0
    _
  %s8 = ssub.s32 1, %s6
  %s9 = scalar_select 0, %s8, %s6
  $region1: #{net_forward_prepared.1} parent=0
    #allocation2 [shape = 'u8[4096]{0}', space=vmem, size = 0x1000, scoped, tag = 'output window, operand 0, single buffered']
    #allocation3 [shape = 's32[1]{0}', space=sflag, size = 0x4, scoped, tag = 'scoped memory for net_forward_prepared.1']
    %10 = vsyncpa [#allocation3], 0
    // Predicated region
    $region2: #{net_forward_prepared.1} parent=1 // pred_check
      _
    $region3: #{net_forward_prepared.1} parent=1 // pred_check_branch
      %12 = sbr.rel (0) target = $region5
    $region4: #{net_forward_prepared.1} parent=1 // pred_region
      _
    $region5: #{net_forward_prepared.1} parent=1 // pred_fallthru
      _
    // Predicated region
    $region6: #{net_forward_prepared.1} parent=1 // pred_check
      _
    $region7: #{net_forward_prepared.1} parent=1 // pred_check_branch
      %14 = sbr.rel (0) target = $region9
    $region8: #{net_forward_prepared.1} parent=1 // pred_region
      _
    $region9: #{net_forward_prepared.1} parent=1 // pred_fallthru
      _
    // Predicated region
    $region10: #{net_forward_prepared.1} parent=1 // pred_check
      _
    $region11: #{net_forward_prepared.1} parent=1 // pred_check_branch
      %16 = sbr.rel (0) target = $region13
    $region12: #{net_forward_prepared.1} parent=1 // pred_region
      _
    $region13: #{net_forward_prepared.1} parent=1 // pred_fallthru
      _
    // Predicated region
    $region14: #{net_forward_prepared.1} parent=1 // pred_check
      _
    $region15: #{net_forward_prepared.1} parent=1 // pred_check_branch
      %18 = sbr.rel (0) target = $region17
    $region16: #{net_forward_prepared.1} parent=1 // pred_region
      _
    $region17: #{net_forward_prepared.1} parent=1 // pred_fallthru
      _
    // Predicated region
    $region18: #{net_forward_prepared.1} parent=1 // pred_check
      _
    $region19: #{net_forward_prepared.1} parent=1 // pred_check_branch
      %20 = sbr.rel (0) target = $region21
    $region20: #{net_forward_prepared.1} parent=1 // pred_region
      _
    $region21: #{net_forward_prepared.1} parent=1 // pred_fallthru
      _
    %v21 = vld [vmem:[%s0] sm:$0xff]
    %v22 = vld [vmem:[%s1] sm:$0xff]
    %v23 = vld [vmem:[%s1 + $0x8] sm:$0xff]
    %v24 = vld [vmem:[%s1 + $0x10] sm:$0xff]
    %v25 = vld [vmem:[%s1 + $0x18] sm:$0xff]
    %v26 = vld [vmem:[%s2] sm:$0x1]
    %v28 = vperm.slane %v26, 0
    %vm30 = vcmask 261120
    %v32 = vsel %vm30, %v21, 0
    %34 = vmatpush.msra.mxu0 0.0
    %35 = vmatpush.msra.mxu0 0.0
    %36 = vmatpush.msra.mxu0 0.0
    %37 = vmatpush.msra.mxu0 0.0
    %38 = vmatpush.msra.mxu0 0.0
    %39 = vmatpush.msra.mxu0 0.0
    %40 = vmatpush.msra.mxu0 0.0
    %41 = vmatpush.msra.mxu0 0.0
    %42 = vmatpush.msra.mxu0 0.0
    %43 = vmatpush.msra.mxu0 0.0
    %44 = vmatpush.msra.mxu0 0.0
    %45 = vmatpush.msra.mxu0 0.0
    %46 = vmatpush.msra.mxu0 %v25
    %47 = vmatpush.msra.mxu0 %v24
    %48 = vmatpush.msra.mxu0 %v23
    %49 = vmatpush.msra.mxu0 %v22
    %50 = vmatmul.f32.gmra.mxu0 %v32
    %v51 = vpop.f32.mrf.mxu0
    %v52 = vadd.f32 %v28, %v51
    %53 = vdwg.mxu0
    %v54 = vmax.f32 %v52, 0.0
    %v55 = vld [vmem:[%s3] sm:$0xff]
    %v56 = vld [vmem:[%s3 + $0x8] sm:$0xff]
    %v57 = vld [vmem:[%s3 + $0x10] sm:$0xff]
    %v58 = vld [vmem:[%s3 + $0x18] sm:$0xff]
    %v59 = vld [vmem:[%s3 + $0x20] sm:$0xff]
    %v60 = vld [vmem:[%s3 + $0x28] sm:$0xff]
    %v61 = vld [vmem:[%s3 + $0x30] sm:$0xff]
    %v62 = vld [vmem:[%s3 + $0x38] sm:$0xff]
    %v63 = vld [vmem:[%s3 + $0x40] sm:$0xff]
    %v64 = vld [vmem:[%s3 + $0x48] sm:$0xff]
    %v65 = vld [vmem:[%s3 + $0x50] sm:$0xff]
    %v66 = vld [vmem:[%s3 + $0x58] sm:$0xff]
    %v67 = vld [vmem:[%s3 + $0x60] sm:$0xff]
    %v68 = vld [vmem:[%s3 + $0x68] sm:$0xff]
    %v69 = vld [vmem:[%s3 + $0x70] sm:$0xff]
    %v70 = vld [vmem:[%s3 + $0x78] sm:$0xff]
    %v71 = vld [vmem:[%s4] sm:$0x1]
    %v73 = vperm.slane %v71, 0
    %75 = vmatpush.msra.mxu0 %v70
    %76 = vmatpush.msra.mxu0 %v69
    %77 = vmatpush.msra.mxu0 %v68
    %78 = vmatpush.msra.mxu0 %v67
    %79 = vmatpush.msra.mxu0 %v66
    %80 = vmatpush.msra.mxu0 %v65
    %81 = vmatpush.msra.mxu0 %v64
    %82 = vmatpush.msra.mxu0 %v63
    %83 = vmatpush.msra.mxu0 %v62
    %84 = vmatpush.msra.mxu0 %v61
    %85 = vmatpush.msra.mxu0 %v60
    %86 = vmatpush.msra.mxu0 %v59
    %87 = vmatpush.msra.mxu0 %v58
    %88 = vmatpush.msra.mxu0 %v57
    %89 = vmatpush.msra.mxu0 %v56
    %90 = vmatpush.msra.mxu0 %v55
    %91 = vmatmul.f32.gmra.mxu0 %v54
    %v92 = vpop.f32.mrf.mxu0
    %v93 = vadd.f32 %v73, %v92
    %94 = vdwg.mxu0
    %vm95 = vcmask 523264
    %96 = vst.msk [vmem:[#allocation2] sm:$0xff] %vm95, %v93
    // Predicated region
    $region22: #{net_forward_prepared.1} parent=1 // pred_check
      _
    $region23: #{net_forward_prepared.1} parent=1 // pred_check_branch
      %98 = sbr.rel (0) target = $region25
    $region24: #{net_forward_prepared.1} parent=1 // pred_region
      %100 = vsyncadd [#allocation3], 0
      %s102 = sshll.u32 [#allocation2], 4
      %s103 = int_to_ptr.vmem [resolvable:$true] %s102
      %s104 = sshll.u32 %s5, 4
      %s105 = int_to_ptr.hbm [resolvable:$true] %s104
      %107 = dma.vmem_to_hbm [thread:$0]  %s103, 128, %s105, [#allocation3]
    $region25: #{net_forward_prepared.1} parent=1 // pred_fallthru
      _
    // Predicated region
    $region26: #{net_forward_prepared.1} parent=1 // pred_check
      _
    $region27: #{net_forward_prepared.1} parent=1 // pred_check_branch
      %109 = sbr.rel (0) target = $region29
    $region28: #{net_forward_prepared.1} parent=1 // pred_region
      %111 = dma.done [#allocation3], 128
    $region29: #{net_forward_prepared.1} parent=1 // pred_fallthru
      _
    %112 = vsyncpa [#allocation3], 1

</llo_original>
